<compile_context>
chip_gen: v6e
topology: v6e:2x2x1
jax: 0.10.0
libtpu: 0.0.40
codegen_flags: <defaults>
</compile_context>

<pallas_src>
import functools

import jax
import jax.numpy as jnp
from jax import lax
from jax.experimental import pallas as pl
from jax.experimental.pallas import tpu as pltpu

_EPS = 1e-5  # nn.InstanceNorm2d default eps


def conv_block_kernel(patches_ref, w_ref, affine_ref, o_ref, *, leaky):
    """One batch element per grid step.

    patches_ref: (1, K, S)   im2col patches (bf16), K = KH*KW*C_in, S = OH*OW
    w_ref:       (C_out, K)  reshaped conv weight (bf16)
    affine_ref:  (C_out, 2)  column 0 = gamma, column 1 = beta (f32)
    o_ref:       (1, C_out, S) output block (f32)
    """
    p = patches_ref[0]                                          # (K, S)
    w = w_ref[...]                                              # (C_out, K)

    # Conv2d(k=4, s=2, p=1, bias=False) as a single MXU matmul, f32 accumulate.
    y = jnp.dot(w, p, preferred_element_type=jnp.float32)       # (C_out, S)

    # InstanceNorm2d: per-channel mean/var over the spatial dim (biased var).
    mu = jnp.mean(y, axis=1, keepdims=True)                     # (C_out, 1)
    var = jnp.mean((y - mu) ** 2, axis=1, keepdims=True)        # (C_out, 1)
    y = (y - mu) * lax.rsqrt(var + _EPS)

    gamma = affine_ref[:, 0:1]                                  # (C_out, 1)
    beta = affine_ref[:, 1:2]                                   # (C_out, 1)
    y = y * gamma + beta

    if leaky:
        y = jnp.where(y > 0, y, 0.01 * y)                       # LeakyReLU(0.01)
    else:
        y = jnp.maximum(y, 0.0)                                 # ReLU

    o_ref[0] = y.astype(o_ref.dtype)


def conv_block_forward(x, weight, gamma, beta, *, leaky=False):
    """x: (B, C_in, H, W) NCHW.  weight: (C_out, C_in, 4, 4) (torch layout).
    Returns (B, C_out, H//2, W//2)."""
    B, C_in, H, W = x.shape
    C_out, _, KH, KW = weight.shape
    OH, OW = H // 2, W // 2
    S = OH * OW
    K = KH * KW * C_in

    # --- static im2col (cheap XLA rearrangement; all slices are static) -------
    xp = jnp.pad(x, ((0, 0), (0, 0), (1, 1), (1, 1)))           # (B, C_in, H+2, W+2)
    cols = [xp[:, :, kh:kh + 2 * OH:2, kw:kw + 2 * OW:2]        # (B, C_in, OH, OW)
            for kh in range(KH) for kw in range(KW)]
    # K ordered as (kh, kw, c_in); S ordered as (oh, ow).
    patches = jnp.stack(cols, axis=1).reshape(B, K, S).astype(jnp.bfloat16)

    # Conv weight reshaped with matching K ordering: (C_out, KH, KW, C_in) -> (C_out, K)
    w_mat = jnp.transpose(weight, (0, 2, 3, 1)).reshape(C_out, K).astype(jnp.bfloat16)

    # Pack the two tiny affine params into one array: one DMA, (C_out, 1) columns.
    affine = jnp.stack([gamma, beta], axis=1).astype(jnp.float32)   # (C_out, 2)

    kernel = functools.partial(conv_block_kernel, leaky=leaky)

    flops = 2 * B * C_out * K * S + 10 * B * C_out * S
    bytes_accessed = (patches.size * 2 + w_mat.size * 2
                      + affine.size * 4 + B * C_out * S * 4)

    out = pl.pallas_call(
        kernel,
        out_shape=jax.ShapeDtypeStruct((B, C_out, S), jnp.float32),
        grid_spec=pltpu.PrefetchScalarGridSpec(
            num_scalar_prefetch=0,
            grid=(B,),
            in_specs=[
                pl.BlockSpec((1, K, S), lambda b: (b, 0, 0)),
                pl.BlockSpec((C_out, K), lambda b: (0, 0)),
                pl.BlockSpec((C_out, 2), lambda b: (0, 0)),
            ],
            out_specs=pl.BlockSpec((1, C_out, S), lambda b: (b, 0, 0)),
        ),
        compiler_params=pltpu.CompilerParams(
            dimension_semantics=("parallel",)),
        cost_estimate=pl.CostEstimate(
            flops=flops,
            transcendentals=B * C_out,
            bytes_accessed=bytes_accessed),
    )(patches, w_mat, affine)

    # Contiguous reshape back to NCHW (no transpose needed).
    return out.reshape(B, C_out, OH, OW)


def _reference(x, weight, gamma, beta, *, leaky=False):
    """Pure-JAX reference matching the PyTorch ConvBlock (down=True) forward."""
    y = lax.conv_general_dilated(
        x, weight, window_strides=(2, 2), padding=((1, 1), (1, 1)),
        dimension_numbers=("NCHW", "OIHW", "NCHW"),
        precision=lax.Precision.HIGHEST)
    mu = jnp.mean(y, axis=(2, 3), keepdims=True)
    var = jnp.var(y, axis=(2, 3), keepdims=True)                # biased, like torch
    y = (y - mu) * lax.rsqrt(var + _EPS)
    y = y * gamma[None, :, None, None] + beta[None, :, None, None]
    return jnp.where(y > 0, y, 0.01 * y) if leaky else jnp.maximum(y, 0.0)


if __name__ == "__main__":
    B, C_IN, C_OUT, H, W = 2, 4, 8, 16, 16

    key = jax.random.PRNGKey(0)
    kx, kw, kg, kb = jax.random.split(key, 4)
    x = jax.random.normal(kx, (B, C_IN, H, W), jnp.float32)
    weight = jax.random.normal(kw, (C_OUT, C_IN, 4, 4), jnp.float32) / jnp.sqrt(C_IN * 16.0)
    gamma = 1.0 + 0.1 * jax.random.normal(kg, (C_OUT,), jnp.float32)
    beta = 0.1 * jax.random.normal(kb, (C_OUT,), jnp.float32)

    out = conv_block_forward(x, weight, gamma, beta, leaky=False)
    out = jax.block_until_ready(out)

    assert out.shape == (B, C_OUT, H // 2, W // 2)
    assert bool(jnp.all(jnp.isfinite(out)))

    ref = _reference(x, weight, gamma, beta, leaky=False)
    max_err = float(jnp.max(jnp.abs(out - ref)))
    assert bool(jnp.allclose(out, ref, atol=5e-2, rtol=5e-2)), f"max_err={max_err}"

    print("KERNEL_OK")
</pallas_src>

<mosaic_0001>
module attributes {stable_mosaic.version = 11 : i64} {
  func.func @conv_block_kernel(%arg0: i32, %arg1: memref<1x64x64xbf16, #tpu.memory_space<vmem>>, %arg2: memref<8x64xbf16, #tpu.memory_space<vmem>>, %arg3: memref<8x2xf32, #tpu.memory_space<vmem>>, %arg4: memref<1x8x64xf32, #tpu.memory_space<vmem>>) attributes {dimension_semantics = [#tpu.dimension_semantics<parallel>], iteration_bounds = array<i64: 2>, scalar_prefetch = 0 : i64, scratch_operands = 0 : i64, tpu.core_type = #tpu.core_type<tc>, window_params = [{transform_indices = @transform_0, window_bounds = array<i64: 1, 64, 64>}, {pipeline_mode = #tpu.pipeline_mode<synchronous>, transform_indices = @transform_1, window_bounds = array<i64: 8, 64>}, {pipeline_mode = #tpu.pipeline_mode<synchronous>, transform_indices = @transform_2, window_bounds = array<i64: 8, 2>}, {transform_indices = @transform_3, window_bounds = array<i64: 1, 8, 64>}]} {
    %c0 = arith.constant 0 : index
    %c0_0 = arith.constant 0 : index
    %c0_1 = arith.constant 0 : index
    %0 = vector.load %arg1[%c0, %c0_0, %c0_1] : memref<1x64x64xbf16, #tpu.memory_space<vmem>>, vector<1x64x64xbf16>
    %1 = vector.shape_cast %0 : vector<1x64x64xbf16> to vector<64x64xbf16>
    %c0_2 = arith.constant 0 : index
    %c0_3 = arith.constant 0 : index
    %2 = vector.load %arg2[%c0_2, %c0_3] : memref<8x64xbf16, #tpu.memory_space<vmem>>, vector<8x64xbf16>
    %cst = arith.constant dense<0.000000e+00> : vector<8x64xf32>
    %3 = tpu.matmul %2, %1, %cst {dimension_numbers = #tpu.dot_dimension_numbers<[1], [0], [0], [1], [0, 0, 1, 1], [], []>} : vector<8x64xbf16>, vector<64x64xbf16>, vector<8x64xf32> -> vector<8x64xf32>
    %cst_4 = arith.constant dense<0.000000e+00> : vector<8xf32>
    %4 = vector.multi_reduction <add>, %3, %cst_4 [1] : vector<8x64xf32> to vector<8xf32>
    %5 = vector.shape_cast %4 : vector<8xf32> to vector<8x1xf32>
    %cst_5 = arith.constant 6.400000e+01 : f32
    %6 = vector.broadcast %cst_5 : f32 to vector<8x1xf32>
    %7 = arith.divf %5, %6 : vector<8x1xf32>
    %8 = vector.broadcast %7 : vector<8x1xf32> to vector<8x64xf32>
    %9 = arith.subf %3, %8 : vector<8x64xf32>
    %10 = arith.mulf %9, %9 : vector<8x64xf32>
    %cst_6 = arith.constant dense<0.000000e+00> : vector<8xf32>
    %11 = vector.multi_reduction <add>, %10, %cst_6 [1] : vector<8x64xf32> to vector<8xf32>
    %12 = vector.shape_cast %11 : vector<8xf32> to vector<8x1xf32>
    %cst_7 = arith.constant 6.400000e+01 : f32
    %13 = vector.broadcast %cst_7 : f32 to vector<8x1xf32>
    %14 = arith.divf %12, %13 : vector<8x1xf32>
    %15 = vector.broadcast %7 : vector<8x1xf32> to vector<8x64xf32>
    %16 = arith.subf %3, %15 : vector<8x64xf32>
    %cst_8 = arith.constant 9.99999974E-6 : f32
    %17 = vector.broadcast %cst_8 : f32 to vector<8x1xf32>
    %18 = arith.addf %14, %17 : vector<8x1xf32>
    %19 = math.rsqrt %18 : vector<8x1xf32>
    %20 = vector.broadcast %19 : vector<8x1xf32> to vector<8x64xf32>
    %21 = arith.mulf %16, %20 : vector<8x64xf32>
    %c0_9 = arith.constant 0 : index
    %c0_10 = arith.constant 0 : index
    %22 = vector.load %arg3[%c0_9, %c0_10] : memref<8x2xf32, #tpu.memory_space<vmem>>, vector<8x1xf32>
    %c0_11 = arith.constant 0 : index
    %c1 = arith.constant 1 : index
    %23 = vector.load %arg3[%c0_11, %c1] : memref<8x2xf32, #tpu.memory_space<vmem>>, vector<8x1xf32>
    %24 = vector.broadcast %22 : vector<8x1xf32> to vector<8x64xf32>
    %25 = arith.mulf %21, %24 : vector<8x64xf32>
    %26 = vector.broadcast %23 : vector<8x1xf32> to vector<8x64xf32>
    %27 = arith.addf %25, %26 : vector<8x64xf32>
    %cst_12 = arith.constant 0.000000e+00 : f32
    %28 = vector.broadcast %cst_12 : f32 to vector<8x64xf32>
    %29 = arith.maximumf %27, %28 : vector<8x64xf32>
    %c0_13 = arith.constant 0 : index
    %c0_14 = arith.constant 0 : index
    %c0_15 = arith.constant 0 : index
    %30 = vector.load %arg4[%c0_13, %c0_14, %c0_15] : memref<1x8x64xf32, #tpu.memory_space<vmem>>, vector<1x8x64xf32>
    %31 = vector.shape_cast %30 : vector<1x8x64xf32> to vector<8x64xf32>
    %32 = vector.shape_cast %29 : vector<8x64xf32> to vector<1x8x64xf32>
    tpu.vector_store %arg4[%c0_13, %c0_14, %c0_15], %32 {strides = array<i32>} : memref<1x8x64xf32, #tpu.memory_space<vmem>>, vector<1x8x64xf32>,
    return
  }
  func.func @transform_0(%arg0: i32) -> (i32, i32, i32) {
    %c0_i32 = arith.constant 0 : i32
    %c0_i32_0 = arith.constant 0 : i32
    %c0_i32_1 = arith.constant 0 : i32
    return %arg0, %c0_i32, %c0_i32_0 : i32, i32, i32
  }
  func.func @transform_1(%arg0: i32) -> (i32, i32) {
    %c0_i32 = arith.constant 0 : i32
    %c0_i32_0 = arith.constant 0 : i32
    %c0_i32_1 = arith.constant 0 : i32
    return %c0_i32, %c0_i32_0 : i32, i32
  }
  func.func @transform_2(%arg0: i32) -> (i32, i32) {
    %c0_i32 = arith.constant 0 : i32
    %c0_i32_0 = arith.constant 0 : i32
    %c0_i32_1 = arith.constant 0 : i32
    return %c0_i32, %c0_i32_0 : i32, i32
  }
  func.func @transform_3(%arg0: i32) -> (i32, i32, i32) {
    %c0_i32 = arith.constant 0 : i32
    %c0_i32_0 = arith.constant 0 : i32
    %c0_i32_1 = arith.constant 0 : i32
    return %arg0, %c0_i32, %c0_i32_0 : i32, i32, i32
  }
}

</mosaic_0001>

<llo_original>
// kernel: tpu_custom_call.1
$region0: #{tpu_custom_call.1}
  #allocation0 [shape = 'u32[]', space=smem, size = 0x4, offset = 0x4, fixed_abs, tag = 'smem constant byte address 0x4 - core index']
  #allocation1 [shape = 'u32[144,128]{1,0:T(1,128)}', space=vmem, size = 0x12000, scoped, tag = 'internal scratch']
  %s0 = inlined_call_operand.hbm [shape: bf16[2,64,64], index: 0, kind: input, shape index: {}]
  %s1 = inlined_call_operand.vmem [shape: bf16[8,64], index: 1, kind: input, shape index: {}]
  %s2 = inlined_call_operand.vmem [shape: f32[8,2], index: 2, kind: input, shape index: {}]
  %s3 = inlined_call_operand.hbm [shape: f32[2,8,64], index: 3, kind: output, shape index: {}]
  %s4 = sld [smem:[#allocation0]]
  $region49: #{tpu_custom_call.1} parent=0
    _
  %s6 = ssub.s32 1, %s4
  %s7 = scalar_select 0, %s6, %s4
  $region1: #{tpu_custom_call.1} parent=0
    #allocation2 [shape = 'u8[32768]{0}', space=vmem, size = 0x8000, scoped, tag = 'input window, operand 0']
    #allocation3 [shape = 's32[2]{0}', space=sflag, size = 0x8, scoped, tag = 'scoped memory for tpu_custom_call.1']
    #allocation4 [shape = 's32[2]{0}', space=sflag, size = 0x8, scoped, tag = 'scoped memory for tpu_custom_call.1']
    #allocation5 [shape = 'u8[8192]{0}', space=vmem, size = 0x2000, scoped, tag = 'output window, operand 0']
    %8 = vsyncpa [#allocation3], 0
    %s9 = scalar_lea.sflag [#allocation3], 1
    %10 = vsyncpa %s9, 0
    %11 = vsyncpa [#allocation4], 0
    %s12 = scalar_lea.sflag [#allocation4], 1
    %13 = vsyncpa %s12, 0
    loop: start=0, step=1, limit=4
    $region2: #{tpu_custom_call.1} parent=1 // loop_pre_header
      _
    $region3: #{tpu_custom_call.1} parent=1 // loop_header
      %s15 = sphi 0, %s19
      %p16 = scmp.ge.s32.totalorder %s15, 4
      %s25 = sphi 0, %s27
      %s28 = sphi 0, %s25
      %s29 = sphi 0, %s28
      %s45 = sphi 0, %s29
      %s49 = sphi 0, %s49
      %s51 = sphi 0, %s49
      %s52 = sphi 0, %s51
      %s66 = sphi 0, %s52
      %s70 = sphi 0, %s70
      %s72 = sphi 0, %s70
      %s73 = sphi 0, %s72
      %s87 = sphi 0, %s73
      %s93 = sphi 0, %s95
      %s96 = sphi 0, %s93
      %s97 = sphi 0, %s96
      %s113 = sphi 0, %s97
    $region4: #{tpu_custom_call.1} parent=1 // loop_header_branch
      %18 = sbr.rel (%p16) target = $region8
    $region5: #{tpu_custom_call.1} parent=1 // loop_body
      %s20 = ssub.s32 %s15, 1
      %s21 = ssub.s32 %s15, 2
      %s22 = sadd.s32 %s15, 1
      %s23 = ssub.s32 %s15, %s22
      %p24 = scmp.eq.s32.totalorder %s23, 0
      %s26 = sadd.s32 %s25, 1
      %s27 = scalar_select %p24, %s25, %s26
      %p30 = pneg %p24
      %p31 = scmp.eq.s32.totalorder %s15, 1
      %p32 = por %p30, %p31
      %p33 = scmp.ne.s32.totalorder %s25, %s28
      %p34 = scmp.eq.s32.totalorder %s15, 0
      %p35 = por %p33, %p34
      %p36 = scmp.ne.s32.totalorder %s25, %s28
      %p37 = scmp.eq.s32.totalorder %s20, 1
      %p38 = por %p36, %p37
      %p39 = scmp.ne.s32.totalorder %s28, %s29
      %p40 = scmp.eq.s32.totalorder %s20, 0
      %p41 = por %p39, %p40
      %p42 = scmp.ne.s32.totalorder %s28, %s29
      %p43 = scmp.eq.s32.totalorder %s21, 1
      %p44 = por %p42, %p43
      %p46 = scmp.ne.s32.totalorder %s29, %s45
      %p47 = scmp.eq.s32.totalorder %s21, 0
      %p48 = por %p46, %p47
      %s50 = sadd.s32 %s49, 1
      %p53 = scmp.eq.s32.totalorder %s15, 1
      %p54 = scmp.ne.s32.totalorder %s49, %s51
      %p55 = scmp.eq.s32.totalorder %s15, 0
      %p56 = por %p54, %p55
      %p57 = scmp.ne.s32.totalorder %s49, %s51
      %p58 = scmp.eq.s32.totalorder %s20, 1
      %p59 = por %p57, %p58
      %p60 = scmp.ne.s32.totalorder %s51, %s52
      %p61 = scmp.eq.s32.totalorder %s20, 0
      %p62 = por %p60, %p61
      %p63 = scmp.ne.s32.totalorder %s51, %s52
      %p64 = scmp.eq.s32.totalorder %s21, 1
      %p65 = por %p63, %p64
      %p67 = scmp.ne.s32.totalorder %s52, %s66
      %p68 = scmp.eq.s32.totalorder %s21, 0
      %p69 = por %p67, %p68
      %s71 = sadd.s32 %s70, 1
      %p74 = scmp.eq.s32.totalorder %s15, 1
      %p75 = scmp.ne.s32.totalorder %s70, %s72
      %p76 = scmp.eq.s32.totalorder %s15, 0
      %p77 = por %p75, %p76
      %p78 = scmp.ne.s32.totalorder %s70, %s72
      %p79 = scmp.eq.s32.totalorder %s20, 1
      %p80 = por %p78, %p79
      %p81 = scmp.ne.s32.totalorder %s72, %s73
      %p82 = scmp.eq.s32.totalorder %s20, 0
      %p83 = por %p81, %p82
      %p84 = scmp.ne.s32.totalorder %s72, %s73
      %p85 = scmp.eq.s32.totalorder %s21, 1
      %p86 = por %p84, %p85
      %p88 = scmp.ne.s32.totalorder %s73, %s87
      %p89 = scmp.eq.s32.totalorder %s21, 0
      %p90 = por %p88, %p89
      %s91 = ssub.s32 %s15, %s22
      %p92 = scmp.eq.s32.totalorder %s91, 0
      %s94 = sadd.s32 %s93, 1
      %s95 = scalar_select %p92, %s93, %s94
      %p98 = pneg %p92
      %p99 = scmp.eq.s32.totalorder %s15, 1
      %p100 = por %p98, %p99
      %p101 = scmp.ne.s32.totalorder %s93, %s96
      %p102 = scmp.eq.s32.totalorder %s15, 0
      %p103 = por %p101, %p102
      %p104 = scmp.ne.s32.totalorder %s93, %s96
      %p105 = scmp.eq.s32.totalorder %s20, 1
      %p106 = por %p104, %p105
      %p107 = scmp.ne.s32.totalorder %s96, %s97
      %p108 = scmp.eq.s32.totalorder %s20, 0
      %p109 = por %p107, %p108
      %p110 = scmp.ne.s32.totalorder %s96, %s97
      %p111 = scmp.eq.s32.totalorder %s21, 1
      %p112 = por %p110, %p111
      %p114 = scmp.ne.s32.totalorder %s97, %s113
      %p115 = scmp.eq.s32.totalorder %s21, 0
      %p116 = por %p114, %p115
      %p117 = scmp.le.s32.totalorder 1, %s15
      %p118 = scmp.lt.s32.totalorder %s15, 3
      %p119 = pnand %p117, %p118
      %p120 = pneg %p119
      // Predicated region
      $region9: #{tpu_custom_call.1} parent=5 // pred_check
        _
      $region10: #{tpu_custom_call.1} parent=5 // pred_check_branch
        %122 = sbr.rel (%p119) target = $region12
      $region11: #{tpu_custom_call.1} parent=5 // pred_region
        %s123 = ssub.s32 %s15, 1
        // Predicated region
        $region13: #{tpu_custom_call.1} parent=11 // pred_check
          %p124 = pneg %p62
        $region14: #{tpu_custom_call.1} parent=11 // pred_check_branch
          %126 = sbr.rel (%p124) target = $region16
        $region15: #{tpu_custom_call.1} parent=11 // pred_region
          _
        $region16: #{tpu_custom_call.1} parent=11 // pred_fallthru
          _
        // Predicated region
        $region17: #{tpu_custom_call.1} parent=11 // pred_check
          %p127 = pneg %p83
        $region18: #{tpu_custom_call.1} parent=11 // pred_check_branch
          %129 = sbr.rel (%p127) target = $region20
        $region19: #{tpu_custom_call.1} parent=11 // pred_region
          _
        $region20: #{tpu_custom_call.1} parent=11 // pred_fallthru
          _
      $region12: #{tpu_custom_call.1} parent=5 // pred_fallthru
        _
      %p130 = scmp.lt.s32.totalorder %s15, 2
      // Predicated region
      $region21: #{tpu_custom_call.1} parent=5 // pred_check
        %p131 = pneg %p130
      $region22: #{tpu_custom_call.1} parent=5 // pred_check_branch
        %133 = sbr.rel (%p131) target = $region24
      $region23: #{tpu_custom_call.1} parent=5 // pred_region
        // Predicated region
        $region25: #{tpu_custom_call.1} parent=23 // pred_check
          %p134 = pneg %p35
        $region26: #{tpu_custom_call.1} parent=23 // pred_check_branch
          %136 = sbr.rel (%p134) target = $region28
        $region27: #{tpu_custom_call.1} parent=23 // pred_region
          %s137 = sand.u32 %s25, 1
          %s138 = scalar_lea.sflag [#allocation3], %s137
          %s139 = sand.u32 %s25, 1
          %s140 = smul.addr %s139, 32
          %s141 = scalar_lea.vmem [#allocation2], %s140
          %s143 = ssub.s32 512, 512
          %144 = vsyncadd %s138, %s143
          %s145 = smul.addr %s15, 8
          %s146 = smul.addr %s145, 64
          %s147 = scalar_lea.hbm %s0, %s146
          %s148 = sshll.u32 %s141, 4
          %s149 = int_to_ptr.vmem [resolvable:$true] %s148
          %154 = dma.hbm_to_vmem [thread:$0]  %s147, 512, %s149, %s138, 64, 64, 4
        $region28: #{tpu_custom_call.1} parent=23 // pred_fallthru
          _
      $region24: #{tpu_custom_call.1} parent=5 // pred_fallthru
        _
      %p155 = scmp.le.s32.totalorder 1, %s15
      %p156 = scmp.lt.s32.totalorder %s15, 3
      %p157 = pnand %p155, %p156
      %p158 = pneg %p157
      // Predicated region
      $region29: #{tpu_custom_call.1} parent=5 // pred_check
        _
      $region30: #{tpu_custom_call.1} parent=5 // pred_check_branch
        %160 = sbr.rel (%p157) target = $region32
      $region31: #{tpu_custom_call.1} parent=5 // pred_region
        %s161 = ssub.s32 %s15, 1
        %s162 = sand.u32 %s28, 1
        %s163 = scalar_lea.sflag [#allocation3], %s162
        %s164 = sand.u32 %s28, 1
        %s165 = smul.addr %s164, 32
        %s166 = scalar_lea.vmem [#allocation2], %s165
        // Predicated region
        $region33: #{tpu_custom_call.1} parent=31 // pred_check
          %p167 = pneg %p41
        $region34: #{tpu_custom_call.1} parent=31 // pred_check_branch
          %169 = sbr.rel (%p167) target = $region36
        $region35: #{tpu_custom_call.1} parent=31 // pred_region
          %170 = dma.done %s163, 512
        $region36: #{tpu_custom_call.1} parent=31 // pred_fallthru
          _
        %s171 = sand.u32 %s28, 1
        %s172 = scalar_lea.sflag [#allocation3], %s171
        %s173 = sand.u32 %s28, 1
        %s174 = smul.addr %s173, 32
        %s175 = scalar_lea.vmem [#allocation2], %s174
        %p176 = pneg %p41
        %p177 = pneg %p38
        %p178 = pneg %p62
        %p179 = pneg %p59
        %p180 = pneg %p83
        %p181 = pneg %p80
        %p182 = pneg %p109
        %p183 = pneg %p106
        %s184 = sand.u32 %s96, 1
        %s185 = scalar_lea.sflag [#allocation4], %s184
        %s186 = sand.u32 %s96, 1
        %s187 = smul.addr %s186, 8
        %s188 = scalar_lea.vmem [#allocation5], %s187
        %v190 = vld [vmem:[%s166] sm:$0xf]
        %v191 = vld [vmem:[%s166 + $0x4] sm:$0xf]
        %v192 = vld [vmem:[%s166 + $0x8] sm:$0xf]
        %v193 = vld [vmem:[%s166 + $0xc] sm:$0xf]
        %v194 = vld [vmem:[%s166 + $0x10] sm:$0xf]
        %v195 = vld [vmem:[%s166 + $0x14] sm:$0xf]
        %v196 = vld [vmem:[%s166 + $0x18] sm:$0xf]
        %v197 = vld [vmem:[%s166 + $0x1c] sm:$0xf]
        %v198 = vld [vmem:[%s1] sm:$0xf]
        %v207 = vunpack.c.l.b16 %v190
        %v208 = vunpack.c.l.b16 %v191
        %v209 = vunpack.c.l.b16 %v192
        %v210 = vunpack.c.l.b16 %v193
        %v211 = vunpack.c.l.b16 %v194
        %v212 = vunpack.c.l.b16 %v195
        %v213 = vunpack.c.l.b16 %v196
        %v214 = vunpack.c.l.b16 %v197
        %v215 = vpack.c.b16 %v208, %v207
        %v216 = vpack.c.b16 %v210, %v209
        %v217 = vpack.c.b16 %v212, %v211
        %v218 = vpack.c.b16 %v214, %v213
        %vm223 = vcmask 523264
        %v225 = vsel %vm223, %v198, 0
        %227 = vmatprep.subr.bf16.mxu0 0
        %228 = vmatpush1.bf16.msra.mxu0 0
        %229 = vmatprep.subr.bf16.mxu0 0
        %230 = vmatpush1.bf16.msra.mxu0 0
        %231 = vmatprep.subr.bf16.mxu0 0
        %232 = vmatpush1.bf16.msra.mxu0 0
        %233 = vmatprep.subr.bf16.mxu0 0
        %234 = vmatpush1.bf16.msra.mxu0 0
        %235 = vmatprep.subr.bf16.mxu0 0
        %236 = vmatpush1.bf16.msra.mxu0 %v218
        %237 = vmatprep.subr.bf16.mxu0 0
        %238 = vmatpush1.bf16.msra.mxu0 %v217
        %239 = vmatprep.subr.bf16.mxu0 0
        %240 = vmatpush1.bf16.msra.mxu0 %v216
        %241 = vmatprep.subr.bf16.mxu0 0
        %242 = vmatpush1.bf16.msra.mxu0 %v215
        %243 = vmatprep.subr.bf16.mxu0 0
        %244 = vmatpush2.bf16.msra.mxu0 0
        %245 = vmatprep.subr.bf16.mxu0 0
        %246 = vmatpush2.bf16.msra.mxu0 0
        %247 = vmatprep.subr.bf16.mxu0 0
        %248 = vmatpush2.bf16.msra.mxu0 0
        %249 = vmatprep.subr.bf16.mxu0 0
        %250 = vmatpush2.bf16.msra.mxu0 0
        %251 = vmatprep.subr.bf16.mxu0 0
        %252 = vmatpush2.bf16.msra.mxu0 0
        %253 = vmatprep.subr.bf16.mxu0 0
        %254 = vmatpush2.bf16.msra.mxu0 0
        %255 = vmatprep.subr.bf16.mxu0 0
        %256 = vmatpush2.bf16.msra.mxu0 0
        %257 = vmatprep.subr.bf16.mxu0 0
        %258 = vmatpush2.bf16.msra.mxu0 0
        %259 = vmatprep.mubr.bf16.mxu0 0
        %260 = vmatmul.mubr.bf16.gmra.mxu0 %v225
        %v261 = vpop.f32.mrf.mxu0
        %v262 = vadd.f32 0.0, %v261
        %v263 = vpop.f32.mrf.mxu0
        %v264 = vpop.f32.mrf.mxu0
        %v265 = vpop.f32.mrf.mxu0
        %266 = vdwg.mxu0
        %v267 = vsel %vm223, %v262, 0.0
        %268 = vadd.xlane.f32.xlu0 %v267
        %v269 = vpop.xlane.xlu0 %268
        %v270 = vrcp.pop 64.0
        %v271 = vmul.f32 %v269, %v270
        %v272 = vsub.f32 %v262, %v271
        %v273 = vmul.f32 %v272, %v272
        %v274 = vsel %vm223, %v273, 0.0
        %275 = vadd.xlane.f32.xlu0 %v274
        %v276 = vpop.xlane.xlu0 %275
        %v277 = vmul.f32 %v276, %v270
        %v278 = vadd.f32 %v277, 1e-05
        %v279 = vrsqrt.pop %v278
        %v280 = vmul.f32 %v272, %v279
        %v281 = vld [vmem:[%s2] sm:$0xff]
        %283 = vset.pattern.permute.xlu0 0
        %284 = vperm.xlu0 %283, %v281
        %v285 = vpop.permute.xlu0 %284
        %v287 = vmul.f32 %v280, %v285
        %288 = vset.pattern.permute.xlu0 1
        %289 = vperm.xlu0 %288, %v281
        %v290 = vpop.permute.xlu0 %289
        %v292 = vadd.f32 %v287, %v290
        %v293 = vmax.f32 %v292, 0.0
        %294 = vst.msk [vmem:[%s188] sm:$0xff] %vm223, %v293
        %s295 = sand.u32 %s96, 1
        %s296 = scalar_lea.sflag [#allocation4], %s295
        %s297 = sand.u32 %s96, 1
        %s298 = smul.addr %s297, 8
        %s299 = scalar_lea.vmem [#allocation5], %s298
        // Predicated region
        $region37: #{tpu_custom_call.1} parent=31 // pred_check
          %p300 = pneg %p106
        $region38: #{tpu_custom_call.1} parent=31 // pred_check_branch
          %302 = sbr.rel (%p300) target = $region40
        $region39: #{tpu_custom_call.1} parent=31 // pred_region
          %s304 = ssub.s32 128, 128
          %305 = vsyncadd %s296, %s304
          %s306 = smul.addr %s20, 128
          %s307 = scalar_lea.hbm %s3, %s306
          %s309 = sshll.u32 %s299, 4
          %s310 = int_to_ptr.vmem [resolvable:$true] %s309
          %312 = dma.vmem_to_hbm [thread:$0]  %s310, 128, %s307, %s296
        $region40: #{tpu_custom_call.1} parent=31 // pred_fallthru
          _
      $region32: #{tpu_custom_call.1} parent=5 // pred_fallthru
        _
      %p313 = scmp.le.s32.totalorder 2, %s15
      // Predicated region
      $region41: #{tpu_custom_call.1} parent=5 // pred_check
        %p314 = pneg %p313
      $region42: #{tpu_custom_call.1} parent=5 // pred_check_branch
        %316 = sbr.rel (%p314) target = $region44
      $region43: #{tpu_custom_call.1} parent=5 // pred_region
        %s317 = ssub.s32 %s15, 2
        // Predicated region
        $region45: #{tpu_custom_call.1} parent=43 // pred_check
          %p318 = pneg %p112
        $region46: #{tpu_custom_call.1} parent=43 // pred_check_branch
          %320 = sbr.rel (%p318) target = $region48
        $region47: #{tpu_custom_call.1} parent=43 // pred_region
          %s321 = sand.u32 %s97, 1
          %s322 = scalar_lea.sflag [#allocation4], %s321
          %s323 = sand.u32 %s97, 1
          %s324 = smul.addr %s323, 8
          %s325 = scalar_lea.vmem [#allocation5], %s324
          %326 = dma.done %s322, 128
        $region48: #{tpu_custom_call.1} parent=43 // pred_fallthru
          _
      $region44: #{tpu_custom_call.1} parent=5 // pred_fallthru
        _
    $region6: #{tpu_custom_call.1} parent=1 // loop_footer
      %s19 = sadd.s32 1, %s15
    $region7: #{tpu_custom_call.1} parent=1 // loop_footer_branch
      %14 = sbr.rel target = $region3
    $region8: #{tpu_custom_call.1} parent=1 // loop_exit
      _
    %327 = vsyncpa [#allocation3], 1
    %s328 = scalar_lea.sflag [#allocation3], 1
    %329 = vsyncpa %s328, 1
    %330 = vsyncpa [#allocation4], 1
    %s331 = scalar_lea.sflag [#allocation4], 1
    %332 = vsyncpa %s331, 1

</llo_original>
